<compile_context>
chip_gen: v7x
topology: tpu7x:2x2x1
jax: 0.10.0
libtpu: 0.0.40
codegen_flags: <defaults>
</compile_context>

<pallas_src>
import functools
import math

import jax
import jax.numpy as jnp
from jax.experimental import pallas as pl
from jax.experimental.pallas import tpu as pltpu


VMEM_LIMIT_BYTES = 32 * 1024 * 1024  # explicit scoped-VMEM limit (v5e default is 16 MiB)


# ----------------------------------------------------------------------------
# Pallas kernels
# ----------------------------------------------------------------------------
def _mm_k1_kernel(a_ref, b_ref, bias_ref, o_ref, *, relu):
    """Single K-step: out = act(A @ B + bias). No accumulator scratch round-trips."""
    out = jnp.dot(a_ref[...], b_ref[...], preferred_element_type=jnp.float32)
    out = out + bias_ref[...]
    if relu:
        out = jnp.maximum(out, 0.0)
    o_ref[...] = out.astype(o_ref.dtype)


def _mm_k1_res_kernel(a_ref, b_ref, bias_ref, res_ref, o_ref):
    """Single K-step: out = relu(A @ B + bias + residual)."""
    out = jnp.dot(a_ref[...], b_ref[...], preferred_element_type=jnp.float32)
    out = out + bias_ref[...] + res_ref[...].astype(jnp.float32)
    o_ref[...] = jnp.maximum(out, 0.0).astype(o_ref.dtype)


def _mm_kernel(a_ref, b_ref, bias_ref, o_ref, acc_ref, *, relu):
    """Multi K-step: out = act(A @ B + bias); f32 accumulation in VMEM scratch."""
    k = pl.program_id(2)

    @pl.when(k == 0)
    def _init():
        acc_ref[...] = jnp.zeros_like(acc_ref)

    acc_ref[...] += jnp.dot(a_ref[...], b_ref[...],
                            preferred_element_type=jnp.float32)

    @pl.when(k == pl.num_programs(2) - 1)
    def _finalize():
        out = acc_ref[...] + bias_ref[...]
        if relu:
            out = jnp.maximum(out, 0.0)
        o_ref[...] = out.astype(o_ref.dtype)


def _mm_res_kernel(a_ref, b_ref, bias_ref, res_ref, o_ref, acc_ref):
    """Multi K-step: out = relu(A @ B + bias + residual); residual fused in epilogue."""
    k = pl.program_id(2)

    @pl.when(k == 0)
    def _init():
        acc_ref[...] = jnp.zeros_like(acc_ref)

    acc_ref[...] += jnp.dot(a_ref[...], b_ref[...],
                            preferred_element_type=jnp.float32)

    @pl.when(k == pl.num_programs(2) - 1)
    def _finalize():
        out = acc_ref[...] + bias_ref[...] + res_ref[...].astype(jnp.float32)
        o_ref[...] = jnp.maximum(out, 0.0).astype(o_ref.dtype)


def _avgpool_kernel(x_ref, o_ref):
    # x_ref: (1, H*W, C) block -> adaptive average pool (f32 accumulation).
    o_ref[...] = jnp.mean(x_ref[...].astype(jnp.float32), axis=1, keepdims=True)


# ----------------------------------------------------------------------------
# Tile planning (K / N always exactly tiled; M may use a masked boundary block)
# ----------------------------------------------------------------------------
def _choose_m_tile(M):
    if M < 16:
        return M                    # tiny: single block == full dim
    if M >= 1024:
        return 512
    if M >= 512:
        return 256
    if M >= 256:
        return 128
    # 16 <= M < 256: ~2 tiles, multiple of 8 (megacore / pipelining)
    return max(8, ((M + 15) // 16) * 8)


def _choose_n_tile(N):
    if N <= 256:
        return N                    # lane-dense single tile (128 / 236 / 256)
    if N % 256 == 0:
        return 256                  # >= 2 parallel N tiles; matches 256-wide MXU
    if N % 128 == 0:
        return 128
    return N


def _choose_k_tile(K):
    if K <= 512:
        return K
    for cand in range(768, 127, -128):   # K tile must divide K and be 128-aligned
        if K % cand == 0:
            return cand
    return K


def _plan(M, K, N):
    TM = _choose_m_tile(M)
    TN = _choose_n_tile(N)
    TK = _choose_k_tile(K)
    gm = -(-M // TM)
    gn = N // TN
    gk = K // TK
    # Guarantee a few grid steps so BlockSpec double-buffering can overlap DMA/compute.
    while gm * gn * gk < 3 and TK % 256 == 0:
        TK //= 2
        gk = K // TK
    return TM, TN, TK


# ----------------------------------------------------------------------------
# Pallas wrappers
# ----------------------------------------------------------------------------
def matmul_bias_act(a, b, bias, *, relu, residual=None, out_dtype=jnp.bfloat16):
    """out = act(a @ b + bias [+ residual]); a:(M,K), b:(K,N) bf16, bias:(1,N) f32."""
    M, K = a.shape
    K2, N = b.shape
    assert K == K2, (a.shape, b.shape)

    TM, TN, TK = _plan(M, K, N)
    gm = -(-M // TM)
    gn = N // TN
    gk = K // TK

    a = a.astype(jnp.bfloat16)
    b = b.astype(jnp.bfloat16)
    bias = jnp.asarray(bias, jnp.float32).reshape(1, N)

    has_res = residual is not None
    operands = [a, b, bias]
    if has_res:
        assert relu and residual.shape == (M, N)
        operands.append(residual.astype(jnp.bfloat16))

    if gk == 1:
        # Single K step: skip the accumulator scratch entirely.
        grid = (gm, gn)
        in_specs = [pl.BlockSpec((TM, TK), lambda i, j: (i, 0)),
                    pl.BlockSpec((TK, TN), lambda i, j: (0, j)),
                    pl.BlockSpec((1, TN), lambda i, j: (0, j))]
        if has_res:
            in_specs.append(pl.BlockSpec((TM, TN), lambda i, j: (i, j)))
        out_spec = pl.BlockSpec((TM, TN), lambda i, j: (i, j))
        kernel = (_mm_k1_res_kernel if has_res
                  else functools.partial(_mm_k1_kernel, relu=relu))
        scratch = []
        dims = ("parallel", "parallel")
    else:
        grid = (gm, gn, gk)
        in_specs = [pl.BlockSpec((TM, TK), lambda i, j, k: (i, k)),
                    pl.BlockSpec((TK, TN), lambda i, j, k: (k, j)),
                    pl.BlockSpec((1, TN), lambda i, j, k: (0, j))]
        if has_res:
            in_specs.append(pl.BlockSpec((TM, TN), lambda i, j, k: (i, j)))
        out_spec = pl.BlockSpec((TM, TN), lambda i, j, k: (i, j))
        kernel = (_mm_res_kernel if has_res
                  else functools.partial(_mm_kernel, relu=relu))
        scratch = [pltpu.VMEM((TM, TN), jnp.float32)]
        dims = ("parallel", "parallel", "arbitrary")

    return pl.pallas_call(
        kernel,
        out_shape=jax.ShapeDtypeStruct((M, N), out_dtype),
        grid_spec=pltpu.PrefetchScalarGridSpec(
            num_scalar_prefetch=0, grid=grid,
            in_specs=in_specs, out_specs=out_spec, scratch_shapes=scratch),
        compiler_params=pltpu.CompilerParams(
            dimension_semantics=dims, vmem_limit_bytes=VMEM_LIMIT_BYTES),
    )(*operands)


def conv2d_bias(x, conv, *, stride, padding, relu, residual=None,
                out_dtype=jnp.bfloat16):
    """NHWC conv as (bf16) im2col + Pallas MXU matmul with fused bias/ReLU/residual."""
    kh, kw, cin, kdim = conv['kh'], conv['kw'], conv['cin'], conv['kdim']
    N, H, W, C = x.shape
    assert C == cin, (C, cin)
    OH = (H + 2 * padding - kh) // stride + 1
    OW = (W + 2 * padding - kw) // stride + 1

    xb = x.astype(jnp.bfloat16)
    if padding:
        xb = jnp.pad(xb, ((0, 0), (padding, padding), (padding, padding), (0, 0)))

    if kh == 1 and kw == 1 and padding == 0:
        A = xb if stride == 1 else xb[:, ::stride, ::stride, :]
        A = A.reshape(N * OH * OW, cin)
    else:
        # TODO(synk): replace this XLA-side im2col (9x/49x HBM blow-up) with an in-kernel
        #             tap loop (manual DMA of padded row slabs accumulated over K).
        pats = [xb[:, i:i + stride * (OH - 1) + 1:stride,
                   j:j + stride * (OW - 1) + 1:stride, :]
                for i in range(kh) for j in range(kw)]
        A = jnp.stack(pats, axis=3).reshape(N * OH * OW, kh * kw * cin)

    if A.shape[1] < kdim:  # stem only: K=147 -> 256 (weight rows zero-padded at init)
        A = jnp.pad(A, ((0, 0), (0, kdim - A.shape[1])))

    res2d = None if residual is None else residual.reshape(N * OH * OW, -1)
    out = matmul_bias_act(A, conv['w'], conv['b'], relu=relu,
                          residual=res2d, out_dtype=out_dtype)
    return out.reshape(N, OH, OW, -1)


def conv_apply(x, conv, *, stride, padding, relu, residual=None,
               out_dtype=jnp.bfloat16):
    return conv2d_bias(x, conv, stride=stride, padding=padding, relu=relu,
                       residual=residual, out_dtype=out_dtype)


def maxpool2d_3x3s2p1(x):
    # Running maximum over the 9 shifted slices (no 9x patch materialization in HBM).
    N, H, W, C = x.shape
    OH = (H + 2 - 3) // 2 + 1
    OW = (W + 2 - 3) // 2 + 1
    xp = jnp.pad(x, ((0, 0), (1, 1), (1, 1), (0, 0)), constant_values=-jnp.inf)
    out = None
    for i in range(3):
        for j in range(3):
            s = xp[:, i:i + 2 * (OH - 1) + 1:2, j:j + 2 * (OW - 1) + 1:2, :]
            out = s if out is None else jnp.maximum(out, s)
    return out


def global_avgpool(x):
    N, H, W, C = x.shape
    HW = H * W
    xr = x.reshape(N, HW, C)
    out = pl.pallas_call(
        _avgpool_kernel,
        out_shape=jax.ShapeDtypeStruct((N, 1, C), jnp.float32),
        grid=(N,),
        in_specs=[pl.BlockSpec((1, HW, C), lambda i: (i, 0, 0))],
        out_specs=pl.BlockSpec((1, 1, C), lambda i: (i, 0, 0)),
        compiler_params=pltpu.CompilerParams(dimension_semantics=("parallel",)),
    )(xr)
    return out.reshape(N, C)


# ----------------------------------------------------------------------------
# Deterministic parameter initialization (synthetic weights; no checkpoint).
# BatchNorm (eval) is folded exactly into each conv; weights stored bf16 (Kdim, Cout).
# ----------------------------------------------------------------------------
class KeyGen:
    def __init__(self, seed):
        self.key = jax.random.PRNGKey(seed)

    def __call__(self):
        self.key, sub = jax.random.split(self.key)
        return sub


def init_conv_bn(kg, kh, kw, cin, cout, *, cin_pad=None, cout_pad=None,
                 kdim=None, eps=1e-5):
    cin_pad = cin if cin_pad is None else cin_pad
    cout_pad = cout if cout_pad is None else cout_pad
    fan_in = kh * kw * cin
    w = jax.random.normal(kg(), (kh, kw, cin, cout), jnp.float32) * math.sqrt(2.0 / fan_in)
    gamma = 1.0 + 0.1 * jax.random.normal(kg(), (cout,), jnp.float32)
    beta = 0.1 * jax.random.normal(kg(), (cout,), jnp.float32)
    mean = 0.1 * jax.random.normal(kg(), (cout,), jnp.float32)
    var = 1.0 + 0.1 * jnp.abs(jax.random.normal(kg(), (cout,), jnp.float32))
    s = gamma / jnp.sqrt(var + eps)
    w = w * s[None, None, None, :]
    b = beta - mean * s
    # Lane-dense channel padding: extra input channels are exact zeros upstream (zero
    # weight rows keep the math identical); extra output channels get zero weights and
    # zero bias, so they stay exactly 0 downstream.
    w = jnp.pad(w, ((0, 0), (0, 0), (0, cin_pad - cin), (0, cout_pad - cout)))
    b = jnp.pad(b, (0, cout_pad - cout))
    w2d = w.reshape(kh * kw * cin_pad, cout_pad)
    kdim = w2d.shape[0] if kdim is None else kdim
    if kdim > w2d.shape[0]:
        w2d = jnp.pad(w2d, ((0, kdim - w2d.shape[0]), (0, 0)))
    return {
        'w': w2d.astype(jnp.bfloat16),
        'b': b.reshape(1, cout_pad).astype(jnp.float32),
        'kh': kh, 'kw': kw, 'cin': cin_pad, 'cout': cout_pad, 'kdim': kdim,
    }


def init_params(seed=0):
    kg = KeyGen(seed)
    # Stem: Cout 64 -> 128 (lane-dense), K 147 -> 256.
    params = {'conv1': init_conv_bn(kg, 7, 7, 3, 64, cout_pad=128, kdim=256)}

    # ResNet-50: layers = [3, 4, 6, 3] bottleneck blocks, expansion 4.
    layers_cfg = [(64, 3, 1), (128, 4, 2), (256, 6, 2), (512, 3, 2)]
    inplanes = 64       # logical channel count
    in_actual = 128     # padded channel count of the running activation tensor
    layers = []
    for planes, nblocks, stride in layers_cfg:
        pp = 128 if planes == 64 else planes    # lane-dense padded planes
        blocks = []
        for bi in range(nblocks):
            s = stride if bi == 0 else 1
            blk = {
                'stride': s,
                'conv1': init_conv_bn(kg, 1, 1, inplanes, planes,
                                      cin_pad=in_actual, cout_pad=pp),
                'conv2': init_conv_bn(kg, 3, 3, planes, planes,
                                      cin_pad=pp, cout_pad=pp),
                'conv3': init_conv_bn(kg, 1, 1, planes, planes * 4, cin_pad=pp),
            }
            if bi == 0:  # downsample branch (stride != 1 or channel change)
                blk['down'] = init_conv_bn(kg, 1, 1, inplanes, planes * 4,
                                           cin_pad=in_actual)
            blocks.append(blk)
            inplanes = planes * 4
            in_actual = planes * 4
        layers.append(blocks)
    params['layers'] = layers

    # ResNetEncoder head: Linear(2048, 1024) -> ReLU -> Linear(1024, 236)
    params['fc1_w'] = (jax.random.normal(kg(), (2048, 1024), jnp.float32)
                       * math.sqrt(2.0 / 2048)).astype(jnp.bfloat16)
    params['fc1_b'] = (0.01 * jax.random.normal(kg(), (1024,), jnp.float32)).reshape(1, 1024)
    params['fc2_w'] = (jax.random.normal(kg(), (1024, 236), jnp.float32)
                       * math.sqrt(1.0 / 1024)).astype(jnp.bfloat16)
    params['fc2_b'] = (0.01 * jax.random.normal(kg(), (236,), jnp.float32)).reshape(1, 236)
    return params


# ----------------------------------------------------------------------------
# Forward pass
# ----------------------------------------------------------------------------
def bottleneck(x, blk):
    if 'down' in blk:
        identity = conv_apply(x, blk['down'], stride=blk['stride'], padding=0, relu=False)
    else:
        identity = x
    out = conv_apply(x, blk['conv1'], stride=1, padding=0, relu=True)
    out = conv_apply(out, blk['conv2'], stride=blk['stride'], padding=1, relu=True)
    # conv3 + BN + residual add + ReLU all fused into the matmul epilogue.
    out = conv_apply(out, blk['conv3'], stride=1, padding=0, relu=True, residual=identity)
    return out


# FLAME feature index (matches _FLAME_FEATURE_INDEX); out_features = 236.
FEATURE_INDEX = (
    ('identity', (0, 100)),
    ('texture', (100, 150)),
    ('expression', (150, 200)),
    ('global_rotation', (200, 203)),
    ('jaw_rotation', (203, 206)),
    ('scale', (206, 207)),
    ('xy_translation', (207, 209)),
    ('light', (209, 236)),
)


def decompose_flame_coeffs(coeffs):
    out = {}
    for name, (s, e) in FEATURE_INDEX:
        c = coeffs[:, s:e]
        if name == 'light':
            c = c.reshape(-1, 9, 3)
        out[name] = c
    return out


def deca_encoder_forward(params, x_nchw):
    """DECAEncoder.forward with use_detail=False (no E_detail branch)."""
    # NCHW -> NHWC
    x = jnp.transpose(x_nchw, (0, 2, 3, 1)).astype(jnp.float32)

    # ResNet-50 backbone (fc removed, features -> 2048)
    x = conv_apply(x, params['conv1'], stride=2, padding=3, relu=True)  # conv1+bn1+relu
    x = maxpool2d_3x3s2p1(x)                                            # maxpool
    for blocks in params['layers']:                                     # layer1..layer4
        for blk in blocks:
            x = bottleneck(x, blk)
    feat = global_avgpool(x)                                            # (N, 2048) f32

    # ResNetEncoder head
    h = matmul_bias_act(feat, params['fc1_w'], params['fc1_b'],
                        relu=True, out_dtype=jnp.bfloat16)
    coeffs = matmul_bias_act(h, params['fc2_w'], params['fc2_b'],
                             relu=False, out_dtype=jnp.float32)

    # decompose_flame_coeffs
    return decompose_flame_coeffs(coeffs)


# TODO(synk): checkpoint loading (torch.load of 'E_flame'/'E_detail' state dicts) is not
# reproducible here; weights are deterministic synthetic initializations instead.


if __name__ == "__main__":
    key = jax.random.PRNGKey(0)
    # Small spatial size for the synthetic test (ResNet-50 still reduces it to 1x1).
    x = jax.random.normal(key, (2, 3, 32, 32), jnp.float32)

    params = init_params(seed=0)
    outputs = deca_encoder_forward(params, x)
    outputs = jax.tree_util.tree_map(jax.block_until_ready, outputs)

    expected = {
        'identity': (2, 100), 'texture': (2, 50), 'expression': (2, 50),
        'global_rotation': (2, 3), 'jaw_rotation': (2, 3), 'scale': (2, 1),
        'xy_translation': (2, 2), 'light': (2, 9, 3),
    }
    for name, shape in expected.items():
        assert outputs[name].shape == shape, (name, outputs[name].shape)
        assert bool(jnp.all(jnp.isfinite(outputs[name])))

    print("KERNEL_OK")
</pallas_src>

<mosaic_0001>
module attributes {stable_mosaic.version = 11 : i64} {
  func.func @_mm_kernel(%arg0: i32, %arg1: i32, %arg2: i32, %arg3: memref<256x128xbf16, #tpu.memory_space<vmem>>, %arg4: memref<128x128xbf16, #tpu.memory_space<vmem>>, %arg5: memref<1x128xf32, #tpu.memory_space<vmem>>, %arg6: memref<256x128xbf16, #tpu.memory_space<vmem>>, %arg7: memref<256x128xf32, #tpu.memory_space<vmem>>) attributes {dimension_semantics = [#tpu.dimension_semantics<parallel>, #tpu.dimension_semantics<parallel>, #tpu.dimension_semantics<arbitrary>], iteration_bounds = array<i64: 2, 1, 2>, scalar_prefetch = 0 : i64, scratch_operands = 1 : i64, tpu.core_type = #tpu.core_type<tc>, window_params = [{transform_indices = @transform_0, window_bounds = array<i64: 256, 128>}, {transform_indices = @transform_1, window_bounds = array<i64: 128, 128>}, {transform_indices = @transform_2, window_bounds = array<i64: 1, 128>}, {transform_indices = @transform_3, window_bounds = array<i64: 256, 128>}]} {
    %c0_i32 = arith.constant 0 : i32
    %0 = arith.cmpi eq, %arg2, %c0_i32 : i32
    %1 = arith.extui %0 : i1 to i32
    %c0_i32_0 = arith.constant 0 : i32
    %2 = arith.cmpi ne, %1, %c0_i32_0 : i32
    scf.if %2 {
      %cst_9 = arith.constant 0.000000e+00 : f32
      %12 = vector.broadcast %cst_9 : f32 to vector<256x128xf32>
      %c0_10 = arith.constant 0 : index
      %c0_11 = arith.constant 0 : index
      %13 = vector.load %arg7[%c0_10, %c0_11] : memref<256x128xf32, #tpu.memory_space<vmem>>, vector<256x128xf32>
      tpu.vector_store %arg7[%c0_10, %c0_11], %12 {strides = array<i32>} : memref<256x128xf32, #tpu.memory_space<vmem>>, vector<256x128xf32>,
    } else {
    }
    %c0 = arith.constant 0 : index
    %c0_1 = arith.constant 0 : index
    %3 = vector.load %arg7[%c0, %c0_1] : memref<256x128xf32, #tpu.memory_space<vmem>>, vector<256x128xf32>
    %c0_2 = arith.constant 0 : index
    %c0_3 = arith.constant 0 : index
    %4 = vector.load %arg3[%c0_2, %c0_3] : memref<256x128xbf16, #tpu.memory_space<vmem>>, vector<256x128xbf16>
    %c0_4 = arith.constant 0 : index
    %c0_5 = arith.constant 0 : index
    %5 = vector.load %arg4[%c0_4, %c0_5] : memref<128x128xbf16, #tpu.memory_space<vmem>>, vector<128x128xbf16>
    %cst = arith.constant dense<0.000000e+00> : vector<256x128xf32>
    %6 = tpu.matmul %4, %5, %cst {dimension_numbers = #tpu.dot_dimension_numbers<[1], [0], [0], [1], [0, 0, 1, 1], [], []>} : vector<256x128xbf16>, vector<128x128xbf16>, vector<256x128xf32> -> vector<256x128xf32>
    %7 = arith.addf %3, %6 : vector<256x128xf32>
    %c0_6 = arith.constant 0 : index
    %c0_7 = arith.constant 0 : index
    %8 = vector.load %arg7[%c0_6, %c0_7] : memref<256x128xf32, #tpu.memory_space<vmem>>, vector<256x128xf32>
    tpu.vector_store %arg7[%c0_6, %c0_7], %7 {strides = array<i32>} : memref<256x128xf32, #tpu.memory_space<vmem>>, vector<256x128xf32>,
    %c1_i32 = arith.constant 1 : i32
    %9 = arith.cmpi eq, %arg2, %c1_i32 : i32
    %10 = arith.extui %9 : i1 to i32
    %c0_i32_8 = arith.constant 0 : i32
    %11 = arith.cmpi ne, %10, %c0_i32_8 : i32
    scf.if %11 {
      %c0_9 = arith.constant 0 : index
      %c0_10 = arith.constant 0 : index
      %12 = vector.load %arg7[%c0_9, %c0_10] : memref<256x128xf32, #tpu.memory_space<vmem>>, vector<256x128xf32>
      %c0_11 = arith.constant 0 : index
      %c0_12 = arith.constant 0 : index
      %13 = vector.load %arg5[%c0_11, %c0_12] : memref<1x128xf32, #tpu.memory_space<vmem>>, vector<1x128xf32>
      %14 = vector.broadcast %13 : vector<1x128xf32> to vector<256x128xf32>
      %15 = arith.addf %12, %14 : vector<256x128xf32>
      %cst_13 = arith.constant 0.000000e+00 : f32
      %16 = vector.broadcast %cst_13 : f32 to vector<256x128xf32>
      %17 = arith.maximumf %15, %16 : vector<256x128xf32>
      %18 = arith.truncf %17 : vector<256x128xf32> to vector<256x128xbf16>
      %c0_14 = arith.constant 0 : index
      %c0_15 = arith.constant 0 : index
      %19 = vector.load %arg6[%c0_14, %c0_15] : memref<256x128xbf16, #tpu.memory_space<vmem>>, vector<256x128xbf16>
      tpu.vector_store %arg6[%c0_14, %c0_15], %18 {strides = array<i32>} : memref<256x128xbf16, #tpu.memory_space<vmem>>, vector<256x128xbf16>,
    } else {
    }
    return
  }
  func.func @transform_0(%arg0: i32, %arg1: i32, %arg2: i32) -> (i32, i32) {
    %c0_i32 = arith.constant 0 : i32
    return %arg0, %arg2 : i32, i32
  }
  func.func @transform_1(%arg0: i32, %arg1: i32, %arg2: i32) -> (i32, i32) {
    %c0_i32 = arith.constant 0 : i32
    return %arg2, %arg1 : i32, i32
  }
  func.func @transform_2(%arg0: i32, %arg1: i32, %arg2: i32) -> (i32, i32) {
    %c0_i32 = arith.constant 0 : i32
    %c0_i32_0 = arith.constant 0 : i32
    return %c0_i32, %arg1 : i32, i32
  }
  func.func @transform_3(%arg0: i32, %arg1: i32, %arg2: i32) -> (i32, i32) {
    %c0_i32 = arith.constant 0 : i32
    return %arg0, %arg1 : i32, i32
  }
}

</mosaic_0001>

<llo_original>
// kernel: tpu_custom_call.1
$region0: #{tpu_custom_call.1}
  #allocation0 [shape = 'u32[]', space=smem, size = 0x4, offset = 0x4, fixed_abs, tag = 'smem constant byte address 0x4 - core index']
  #allocation1 [shape = 'u32[144,128]{1,0:T(1,128)}', space=vmem, size = 0x12000, scoped, tag = 'internal scratch']
  #allocation2 [shape = 'f32[256,128]{1,0:T(8,128)}', space=vmem, size = 0x20000, scoped, tag = 'scratch operand']
  %s0 = inlined_call_operand.hbm [shape: bf16[512,256], index: 0, kind: input, shape index: {}]
  %s1 = inlined_call_operand.hbm [shape: bf16[256,128], index: 1, kind: input, shape index: {}]
  %s2 = inlined_call_operand.vmem [shape: f32[1,128], index: 2, kind: input, shape index: {}]
  %s3 = inlined_call_operand.hbm [shape: bf16[512,128], index: 3, kind: output, shape index: {}]
  %s4 = sld [smem:[#allocation0]]
  $region61: #{tpu_custom_call.1} parent=0
    _
  %s6 = ssub.s32 1, %s4
  %s7 = scalar_select 0, %s6, %s4
  $region1: #{tpu_custom_call.1} parent=0
    #allocation3 [shape = 'u8[131072]{0}', space=vmem, size = 0x20000, scoped, tag = 'input window, operand 0']
    #allocation4 [shape = 's32[2]{0}', space=sflag, size = 0x8, scoped, tag = 'scoped memory for tpu_custom_call.1']
    #allocation5 [shape = 's32[2]{0}', space=sflag, size = 0x8, scoped, tag = 'scoped memory for tpu_custom_call.1']
    #allocation6 [shape = 'u8[65536]{0}', space=vmem, size = 0x10000, scoped, tag = 'input window, operand 1']
    #allocation7 [shape = 's32[2]{0}', space=sflag, size = 0x8, scoped, tag = 'scoped memory for tpu_custom_call.1']
    #allocation8 [shape = 'u8[131072]{0}', space=vmem, size = 0x20000, scoped, tag = 'output window, operand 0']
    %8 = vsyncpa [#allocation4], 0
    %s9 = scalar_lea.sflag [#allocation4], 1
    %10 = vsyncpa %s9, 0
    %11 = vsyncpa [#allocation7], 0
    %s12 = scalar_lea.sflag [#allocation7], 1
    %13 = vsyncpa %s12, 0
    %14 = vsyncpa [#allocation5], 0
    %s15 = scalar_lea.sflag [#allocation5], 1
    %16 = vsyncpa %s15, 0
    loop: start=0, step=1, limit=6
    $region2: #{tpu_custom_call.1} parent=1 // loop_pre_header
      _
    $region3: #{tpu_custom_call.1} parent=1 // loop_header
      %s18 = sphi 0, %s22
      %p19 = scmp.ge.s32.totalorder %s18, 6
      %s25 = sphi 0, %s44
      %s26 = sphi 0, %s40
      %s27 = sphi 0, %s36
      %s28 = sphi 0, %s25
      %s29 = sphi 0, %s26
      %s30 = sphi 0, %s27
      %s31 = sphi 0, %s28
      %s32 = sphi 0, %s29
      %s33 = sphi 0, %s30
      %s49 = sphi 0, %s51
      %s52 = sphi 0, %s49
      %s53 = sphi 0, %s52
      %s69 = sphi 0, %s53
      %s77 = sphi 0, %s79
      %s80 = sphi 0, %s77
      %s81 = sphi 0, %s80
      %s97 = sphi 0, %s81
      %s103 = sphi 0, %s105
      %s106 = sphi 0, %s103
      %s107 = sphi 0, %s106
      %s123 = sphi 0, %s107
      %s131 = sphi 0, %s133
      %s134 = sphi 0, %s131
      %s135 = sphi 0, %s134
      %s151 = sphi 0, %s135
    $region4: #{tpu_custom_call.1} parent=1 // loop_header_branch
      %21 = sbr.rel (%p19) target = $region8
    $region5: #{tpu_custom_call.1} parent=1 // loop_body
      %s23 = ssub.s32 %s18, 1
      %s24 = ssub.s32 %s18, 2
      %s34 = sadd.s32 1, %s27
      %p35 = scmp.ge.s32.totalorder %s34, 2
      %s36 = scalar_select %p35, 0, %s34
      %s37 = sadd.s32 1, %s26
      %s38 = scalar_select %p35, %s37, %s26
      %p39 = scmp.ge.s32.totalorder %s38, 1
      %s40 = scalar_select %p39, 0, %s38
      %s41 = sadd.s32 1, %s25
      %s42 = scalar_select %p39, %s41, %s25
      %p43 = scmp.ge.s32.totalorder %s42, 2
      %s44 = scalar_select %p43, 0, %s42
      %s45 = ssub.s32 %s25, %s44
      %s46 = ssub.s32 %s27, %s36
      %s47 = sor.u32 %s45, %s46
      %p48 = scmp.eq.s32.totalorder %s47, 0
      %s50 = sadd.s32 %s49, 1
      %s51 = scalar_select %p48, %s49, %s50
      %p54 = pneg %p48
      %p55 = scmp.eq.s32.totalorder %s18, 3
      %p56 = por %p54, %p55
      %p57 = scmp.ne.s32.totalorder %s49, %s52
      %p58 = scmp.eq.s32.totalorder %s18, 0
      %p59 = por %p57, %p58
      %p60 = scmp.ne.s32.totalorder %s49, %s52
      %p61 = scmp.eq.s32.totalorder %s23, 3
      %p62 = por %p60, %p61
      %p63 = scmp.ne.s32.totalorder %s52, %s53
      %p64 = scmp.eq.s32.totalorder %s23, 0
      %p65 = por %p63, %p64
      %p66 = scmp.ne.s32.totalorder %s52, %s53
      %p67 = scmp.eq.s32.totalorder %s24, 3
      %p68 = por %p66, %p67
      %p70 = scmp.ne.s32.totalorder %s53, %s69
      %p71 = scmp.eq.s32.totalorder %s24, 0
      %p72 = por %p70, %p71
      %s73 = ssub.s32 %s27, %s36
      %s74 = ssub.s32 %s26, %s40
      %s75 = sor.u32 %s73, %s74
      %p76 = scmp.eq.s32.totalorder %s75, 0
      %s78 = sadd.s32 %s77, 1
      %s79 = scalar_select %p76, %s77, %s78
      %p82 = pneg %p76
      %p83 = scmp.eq.s32.totalorder %s18, 3
      %p84 = por %p82, %p83
      %p85 = scmp.ne.s32.totalorder %s77, %s80
      %p86 = scmp.eq.s32.totalorder %s18, 0
      %p87 = por %p85, %p86
      %p88 = scmp.ne.s32.totalorder %s77, %s80
      %p89 = scmp.eq.s32.totalorder %s23, 3
      %p90 = por %p88, %p89
      %p91 = scmp.ne.s32.totalorder %s80, %s81
      %p92 = scmp.eq.s32.totalorder %s23, 0
      %p93 = por %p91, %p92
      %p94 = scmp.ne.s32.totalorder %s80, %s81
      %p95 = scmp.eq.s32.totalorder %s24, 3
      %p96 = por %p94, %p95
      %p98 = scmp.ne.s32.totalorder %s81, %s97
      %p99 = scmp.eq.s32.totalorder %s24, 0
      %p100 = por %p98, %p99
      %s101 = ssub.s32 %s26, %s40
      %p102 = scmp.eq.s32.totalorder %s101, 0
      %s104 = sadd.s32 %s103, 1
      %s105 = scalar_select %p102, %s103, %s104
      %p108 = pneg %p102
      %p109 = scmp.eq.s32.totalorder %s18, 3
      %p110 = por %p108, %p109
      %p111 = scmp.ne.s32.totalorder %s103, %s106
      %p112 = scmp.eq.s32.totalorder %s18, 0
      %p113 = por %p111, %p112
      %p114 = scmp.ne.s32.totalorder %s103, %s106
      %p115 = scmp.eq.s32.totalorder %s23, 3
      %p116 = por %p114, %p115
      %p117 = scmp.ne.s32.totalorder %s106, %s107
      %p118 = scmp.eq.s32.totalorder %s23, 0
      %p119 = por %p117, %p118
      %p120 = scmp.ne.s32.totalorder %s106, %s107
      %p121 = scmp.eq.s32.totalorder %s24, 3
      %p122 = por %p120, %p121
      %p124 = scmp.ne.s32.totalorder %s107, %s123
      %p125 = scmp.eq.s32.totalorder %s24, 0
      %p126 = por %p124, %p125
      %s127 = ssub.s32 %s25, %s44
      %s128 = ssub.s32 %s26, %s40
      %s129 = sor.u32 %s127, %s128
      %p130 = scmp.eq.s32.totalorder %s129, 0
      %s132 = sadd.s32 %s131, 1
      %s133 = scalar_select %p130, %s131, %s132
      %p136 = pneg %p130
      %p137 = scmp.eq.s32.totalorder %s18, 3
      %p138 = por %p136, %p137
      %p139 = scmp.ne.s32.totalorder %s131, %s134
      %p140 = scmp.eq.s32.totalorder %s18, 0
      %p141 = por %p139, %p140
      %p142 = scmp.ne.s32.totalorder %s131, %s134
      %p143 = scmp.eq.s32.totalorder %s23, 3
      %p144 = por %p142, %p143
      %p145 = scmp.ne.s32.totalorder %s134, %s135
      %p146 = scmp.eq.s32.totalorder %s23, 0
      %p147 = por %p145, %p146
      %p148 = scmp.ne.s32.totalorder %s134, %s135
      %p149 = scmp.eq.s32.totalorder %s24, 3
      %p150 = por %p148, %p149
      %p152 = scmp.ne.s32.totalorder %s135, %s151
      %p153 = scmp.eq.s32.totalorder %s24, 0
      %p154 = por %p152, %p153
      %p155 = scmp.le.s32.totalorder 1, %s18
      %p156 = scmp.lt.s32.totalorder %s18, 5
      %p157 = pnand %p155, %p156
      %p158 = pneg %p157
      // Predicated region
      $region9: #{tpu_custom_call.1} parent=5 // pred_check
        _
      $region10: #{tpu_custom_call.1} parent=5 // pred_check_branch
        %160 = sbr.rel (%p157) target = $region12
      $region11: #{tpu_custom_call.1} parent=5 // pred_region
        %s161 = ssub.s32 %s18, 1
        // Predicated region
        $region13: #{tpu_custom_call.1} parent=11 // pred_check
          %p162 = pneg %p119
        $region14: #{tpu_custom_call.1} parent=11 // pred_check_branch
          %164 = sbr.rel (%p162) target = $region16
        $region15: #{tpu_custom_call.1} parent=11 // pred_region
          %p165 = scmp.lt.s32.totalorder %s29, 0
          %s166 = scalar_select %p165, %s29, 0
          %s167 = scalar_lea.vmem %s2, %s166
        $region16: #{tpu_custom_call.1} parent=11 // pred_fallthru
          _
      $region12: #{tpu_custom_call.1} parent=5 // pred_fallthru
        _
      %p168 = scmp.lt.s32.totalorder %s18, 4
      // Predicated region
      $region17: #{tpu_custom_call.1} parent=5 // pred_check
        %p169 = pneg %p168
      $region18: #{tpu_custom_call.1} parent=5 // pred_check_branch
        %171 = sbr.rel (%p169) target = $region20
      $region19: #{tpu_custom_call.1} parent=5 // pred_region
        // Predicated region
        $region21: #{tpu_custom_call.1} parent=19 // pred_check
          %p172 = pneg %p59
        $region22: #{tpu_custom_call.1} parent=19 // pred_check_branch
          %174 = sbr.rel (%p172) target = $region24
        $region23: #{tpu_custom_call.1} parent=19 // pred_region
          %s175 = sand.u32 %s49, 1
          %s176 = scalar_lea.sflag [#allocation4], %s175
          %s177 = sand.u32 %s49, 1
          %s178 = smul.addr %s177, 128
          %s179 = scalar_lea.vmem [#allocation3], %s178
          %s180 = smul.u32 32, %s25
          %s182 = ssub.s32 2048, 2048
          %183 = vsyncadd %s176, %s182
          %s184 = smul.addr %s180, 2
          %s185 = sadd.s32 %s27, %s184
          %s186 = smul.addr %s185, 64
          %s187 = scalar_lea.hbm %s0, %s186
          %s188 = sshll.u32 %s179, 4
          %s189 = int_to_ptr.vmem [resolvable:$true] %s188
          %194 = dma.hbm_to_vmem [thread:$0]  %s187, 2048, %s189, %s176, 128, 64, 4
        $region24: #{tpu_custom_call.1} parent=19 // pred_fallthru
          _
        // Predicated region
        $region25: #{tpu_custom_call.1} parent=19 // pred_check
          %p195 = pneg %p87
        $region26: #{tpu_custom_call.1} parent=19 // pred_check_branch
          %197 = sbr.rel (%p195) target = $region28
        $region27: #{tpu_custom_call.1} parent=19 // pred_region
          %s198 = sand.u32 %s77, 1
          %s199 = scalar_lea.sflag [#allocation7], %s198
          %s200 = sand.u32 %s77, 1
          %s201 = smul.addr %s200, 64
          %s202 = scalar_lea.vmem [#allocation6], %s201
          %s203 = smul.u32 16, %s27
          %s205 = ssub.s32 1024, 1024
          %206 = vsyncadd %s199, %s205
          %s207 = sadd.s32 %s26, %s203
          %s208 = smul.addr %s207, 64
          %s209 = scalar_lea.hbm %s1, %s208
          %s210 = sshll.u32 %s202, 4
          %s211 = int_to_ptr.vmem [resolvable:$true] %s210
          %216 = dma.hbm_to_vmem [thread:$0]  %s209, 1024, %s211, %s199, 64, 64, 4
        $region28: #{tpu_custom_call.1} parent=19 // pred_fallthru
          _
      $region20: #{tpu_custom_call.1} parent=5 // pred_fallthru
        _
      %p217 = scmp.le.s32.totalorder 1, %s18
      %p218 = scmp.lt.s32.totalorder %s18, 5
      %p219 = pnand %p217, %p218
      %p220 = pneg %p219
      // Predicated region
      $region29: #{tpu_custom_call.1} parent=5 // pred_check
        _
      $region30: #{tpu_custom_call.1} parent=5 // pred_check_branch
        %222 = sbr.rel (%p219) target = $region32
      $region31: #{tpu_custom_call.1} parent=5 // pred_region
        %s223 = ssub.s32 %s18, 1
        %s224 = sand.u32 %s52, 1
        %s225 = scalar_lea.sflag [#allocation4], %s224
        %s226 = sand.u32 %s52, 1
        %s227 = smul.addr %s226, 128
        %s228 = scalar_lea.vmem [#allocation3], %s227
        // Predicated region
        $region33: #{tpu_custom_call.1} parent=31 // pred_check
          %p229 = pneg %p65
        $region34: #{tpu_custom_call.1} parent=31 // pred_check_branch
          %231 = sbr.rel (%p229) target = $region36
        $region35: #{tpu_custom_call.1} parent=31 // pred_region
          %232 = dma.done %s225, 2048
        $region36: #{tpu_custom_call.1} parent=31 // pred_fallthru
          _
        %s233 = sand.u32 %s80, 1
        %s234 = scalar_lea.sflag [#allocation7], %s233
        %s235 = sand.u32 %s80, 1
        %s236 = smul.addr %s235, 64
        %s237 = scalar_lea.vmem [#allocation6], %s236
        // Predicated region
        $region37: #{tpu_custom_call.1} parent=31 // pred_check
          %p238 = pneg %p93
        $region38: #{tpu_custom_call.1} parent=31 // pred_check_branch
          %240 = sbr.rel (%p238) target = $region40
        $region39: #{tpu_custom_call.1} parent=31 // pred_region
          %241 = dma.done %s234, 1024
        $region40: #{tpu_custom_call.1} parent=31 // pred_fallthru
          _
        %s242 = sand.u32 %s52, 1
        %s243 = scalar_lea.sflag [#allocation4], %s242
        %s244 = sand.u32 %s52, 1
        %s245 = smul.addr %s244, 128
        %s246 = scalar_lea.vmem [#allocation3], %s245
        %p247 = pneg %p65
        %p248 = pneg %p62
        %s249 = sand.u32 %s80, 1
        %s250 = scalar_lea.sflag [#allocation7], %s249
        %s251 = sand.u32 %s80, 1
        %s252 = smul.addr %s251, 64
        %s253 = scalar_lea.vmem [#allocation6], %s252
        %p254 = pneg %p93
        %p255 = pneg %p90
        %p256 = scmp.lt.s32.totalorder %s29, 0
        %s257 = scalar_select %p256, %s29, 0
        %s258 = scalar_lea.vmem %s2, %s257
        %p259 = pneg %p119
        %p260 = pneg %p116
        %p261 = pneg %p147
        %p262 = pneg %p144
        %s263 = sand.u32 %s134, 1
        %s264 = scalar_lea.sflag [#allocation5], %s263
        %s265 = sand.u32 %s134, 1
        %s266 = smul.addr %s265, 128
        %s267 = scalar_lea.vmem [#allocation8], %s266
        %s268 = smul.u32 32, %s28
        %s269 = smul.u32 16, %s30
        %p270 = scmp.lt.s32.totalorder %s29, 0
        %s271 = scalar_select %p270, %s29, 0
        %s272 = scalar_lea.vmem %s2, %s271
        %s273 = smul.u32 32, %s28
        %p275 = scmp.eq.s32.totalorder %s30, 0
        // Predicated region
        $region41: #{tpu_custom_call.1} parent=31 // pred_check
          %p276 = pneg %p275
        $region42: #{tpu_custom_call.1} parent=31 // pred_check_branch
          %278 = sbr.rel (%p276) target = $region44
        $region43: #{tpu_custom_call.1} parent=31 // pred_region
          %279 = vst [vmem:[#allocation2] sm:$0xff] 0.0
          %280 = vst [vmem:[#allocation2 + $0x8] sm:$0xff] 0.0
          %281 = vst [vmem:[#allocation2 + $0x10] sm:$0xff] 0.0
          %282 = vst [vmem:[#allocation2 + $0x18] sm:$0xff] 0.0
          %283 = vst [vmem:[#allocation2 + $0x20] sm:$0xff] 0.0
          %284 = vst [vmem:[#allocation2 + $0x28] sm:$0xff] 0.0
          %285 = vst [vmem:[#allocation2 + $0x30] sm:$0xff] 0.0
          %286 = vst [vmem:[#allocation2 + $0x38] sm:$0xff] 0.0
          %287 = vst [vmem:[#allocation2 + $0x40] sm:$0xff] 0.0
          %288 = vst [vmem:[#allocation2 + $0x48] sm:$0xff] 0.0
          %289 = vst [vmem:[#allocation2 + $0x50] sm:$0xff] 0.0
          %290 = vst [vmem:[#allocation2 + $0x58] sm:$0xff] 0.0
          %291 = vst [vmem:[#allocation2 + $0x60] sm:$0xff] 0.0
          %292 = vst [vmem:[#allocation2 + $0x68] sm:$0xff] 0.0
          %293 = vst [vmem:[#allocation2 + $0x70] sm:$0xff] 0.0
          %294 = vst [vmem:[#allocation2 + $0x78] sm:$0xff] 0.0
          %295 = vst [vmem:[#allocation2 + $0x80] sm:$0xff] 0.0
          %296 = vst [vmem:[#allocation2 + $0x88] sm:$0xff] 0.0
          %297 = vst [vmem:[#allocation2 + $0x90] sm:$0xff] 0.0
          %298 = vst [vmem:[#allocation2 + $0x98] sm:$0xff] 0.0
          %299 = vst [vmem:[#allocation2 + $0xa0] sm:$0xff] 0.0
          %300 = vst [vmem:[#allocation2 + $0xa8] sm:$0xff] 0.0
          %301 = vst [vmem:[#allocation2 + $0xb0] sm:$0xff] 0.0
          %302 = vst [vmem:[#allocation2 + $0xb8] sm:$0xff] 0.0
          %303 = vst [vmem:[#allocation2 + $0xc0] sm:$0xff] 0.0
          %304 = vst [vmem:[#allocation2 + $0xc8] sm:$0xff] 0.0
          %305 = vst [vmem:[#allocation2 + $0xd0] sm:$0xff] 0.0
          %306 = vst [vmem:[#allocation2 + $0xd8] sm:$0xff] 0.0
          %307 = vst [vmem:[#allocation2 + $0xe0] sm:$0xff] 0.0
          %308 = vst [vmem:[#allocation2 + $0xe8] sm:$0xff] 0.0
          %309 = vst [vmem:[#allocation2 + $0xf0] sm:$0xff] 0.0
          %310 = vst [vmem:[#allocation2 + $0xf8] sm:$0xff] 0.0
        $region44: #{tpu_custom_call.1} parent=31 // pred_fallthru
          _
        %v311 = vld [vmem:[#allocation2] sm:$0xff]
        %v312 = vld [vmem:[#allocation2 + $0x8] sm:$0xff]
        %v313 = vld [vmem:[#allocation2 + $0x10] sm:$0xff]
        %v314 = vld [vmem:[#allocation2 + $0x18] sm:$0xff]
        %v315 = vld [vmem:[#allocation2 + $0x20] sm:$0xff]
        %v316 = vld [vmem:[#allocation2 + $0x28] sm:$0xff]
        %v317 = vld [vmem:[#allocation2 + $0x30] sm:$0xff]
        %v318 = vld [vmem:[#allocation2 + $0x38] sm:$0xff]
        %v319 = vld [vmem:[#allocation2 + $0x40] sm:$0xff]
        %v320 = vld [vmem:[#allocation2 + $0x48] sm:$0xff]
        %v321 = vld [vmem:[#allocation2 + $0x50] sm:$0xff]
        %v322 = vld [vmem:[#allocation2 + $0x58] sm:$0xff]
        %v323 = vld [vmem:[#allocation2 + $0x60] sm:$0xff]
        %v324 = vld [vmem:[#allocation2 + $0x68] sm:$0xff]
        %v325 = vld [vmem:[#allocation2 + $0x70] sm:$0xff]
        %v326 = vld [vmem:[#allocation2 + $0x78] sm:$0xff]
        %v327 = vld [vmem:[#allocation2 + $0x80] sm:$0xff]
        %v328 = vld [vmem:[#allocation2 + $0x88] sm:$0xff]
        %v329 = vld [vmem:[#allocation2 + $0x90] sm:$0xff]
        %v330 = vld [vmem:[#allocation2 + $0x98] sm:$0xff]
        %v331 = vld [vmem:[#allocation2 + $0xa0] sm:$0xff]
        %v332 = vld [vmem:[#allocation2 + $0xa8] sm:$0xff]
        %v333 = vld [vmem:[#allocation2 + $0xb0] sm:$0xff]
        %v334 = vld [vmem:[#allocation2 + $0xb8] sm:$0xff]
        %v335 = vld [vmem:[#allocation2 + $0xc0] sm:$0xff]
        %v336 = vld [vmem:[#allocation2 + $0xc8] sm:$0xff]
        %v337 = vld [vmem:[#allocation2 + $0xd0] sm:$0xff]
        %v338 = vld [vmem:[#allocation2 + $0xd8] sm:$0xff]
        %v339 = vld [vmem:[#allocation2 + $0xe0] sm:$0xff]
        %v340 = vld [vmem:[#allocation2 + $0xe8] sm:$0xff]
        %v341 = vld [vmem:[#allocation2 + $0xf0] sm:$0xff]
        %v342 = vld [vmem:[#allocation2 + $0xf8] sm:$0xff]
        %v343 = vld [vmem:[%s228] sm:$0xf]
        %v344 = vld [vmem:[%s228 + $0x4] sm:$0xf]
        %v345 = vld [vmem:[%s228 + $0x8] sm:$0xf]
        %v346 = vld [vmem:[%s228 + $0xc] sm:$0xf]
        %v347 = vld [vmem:[%s228 + $0x10] sm:$0xf]
        %v348 = vld [vmem:[%s228 + $0x14] sm:$0xf]
        %v349 = vld [vmem:[%s228 + $0x18] sm:$0xf]
        %v350 = vld [vmem:[%s228 + $0x1c] sm:$0xf]
        %v351 = vld [vmem:[%s228 + $0x20] sm:$0xf]
        %v352 = vld [vmem:[%s228 + $0x24] sm:$0xf]
        %v353 = vld [vmem:[%s228 + $0x28] sm:$0xf]
        %v354 = vld [vmem:[%s228 + $0x2c] sm:$0xf]
        %v355 = vld [vmem:[%s228 + $0x30] sm:$0xf]
        %v356 = vld [vmem:[%s228 + $0x34] sm:$0xf]
        %v357 = vld [vmem:[%s228 + $0x38] sm:$0xf]
        %v358 = vld [vmem:[%s228 + $0x3c] sm:$0xf]
        %v359 = vld [vmem:[%s228 + $0x40] sm:$0xf]
        %v360 = vld [vmem:[%s228 + $0x44] sm:$0xf]
        %v361 = vld [vmem:[%s228 + $0x48] sm:$0xf]
        %v362 = vld [vmem:[%s228 + $0x4c] sm:$0xf]
        %v363 = vld [vmem:[%s228 + $0x50] sm:$0xf]
        %v364 = vld [vmem:[%s228 + $0x54] sm:$0xf]
        %v365 = vld [vmem:[%s228 + $0x58] sm:$0xf]
        %v366 = vld [vmem:[%s228 + $0x5c] sm:$0xf]
        %v367 = vld [vmem:[%s228 + $0x60] sm:$0xf]
        %v368 = vld [vmem:[%s228 + $0x64] sm:$0xf]
        %v369 = vld [vmem:[%s228 + $0x68] sm:$0xf]
        %v370 = vld [vmem:[%s228 + $0x6c] sm:$0xf]
        %v371 = vld [vmem:[%s228 + $0x70] sm:$0xf]
        %v372 = vld [vmem:[%s228 + $0x74] sm:$0xf]
        %v373 = vld [vmem:[%s228 + $0x78] sm:$0xf]
        %v374 = vld [vmem:[%s228 + $0x7c] sm:$0xf]
        %v375 = vld [vmem:[%s237] sm:$0xf]
        %v376 = vld [vmem:[%s237 + $0x4] sm:$0xf]
        %v377 = vld [vmem:[%s237 + $0x8] sm:$0xf]
        %v378 = vld [vmem:[%s237 + $0xc] sm:$0xf]
        %v379 = vld [vmem:[%s237 + $0x10] sm:$0xf]
        %v380 = vld [vmem:[%s237 + $0x14] sm:$0xf]
        %v381 = vld [vmem:[%s237 + $0x18] sm:$0xf]
        %v382 = vld [vmem:[%s237 + $0x1c] sm:$0xf]
        %v383 = vld [vmem:[%s237 + $0x20] sm:$0xf]
        %v384 = vld [vmem:[%s237 + $0x24] sm:$0xf]
        %v385 = vld [vmem:[%s237 + $0x28] sm:$0xf]
        %v386 = vld [vmem:[%s237 + $0x2c] sm:$0xf]
        %v387 = vld [vmem:[%s237 + $0x30] sm:$0xf]
        %v388 = vld [vmem:[%s237 + $0x34] sm:$0xf]
        %v389 = vld [vmem:[%s237 + $0x38] sm:$0xf]
        %v390 = vld [vmem:[%s237 + $0x3c] sm:$0xf]
        %v423 = vunpack.c.l.b16 %v343
        %v424 = vunpack.c.l.b16 %v344
        %v425 = vunpack.c.l.b16 %v345
        %v426 = vunpack.c.l.b16 %v346
        %v427 = vunpack.c.l.b16 %v347
        %v428 = vunpack.c.l.b16 %v348
        %v429 = vunpack.c.l.b16 %v349
        %v430 = vunpack.c.l.b16 %v350
        %v431 = vunpack.c.l.b16 %v351
        %v432 = vunpack.c.l.b16 %v352
        %v433 = vunpack.c.l.b16 %v353
        %v434 = vunpack.c.l.b16 %v354
        %v435 = vunpack.c.l.b16 %v355
        %v436 = vunpack.c.l.b16 %v356
        %v437 = vunpack.c.l.b16 %v357
        %v438 = vunpack.c.l.b16 %v358
        %v439 = vunpack.c.l.b16 %v359
        %v440 = vunpack.c.l.b16 %v360
        %v441 = vunpack.c.l.b16 %v361
        %v442 = vunpack.c.l.b16 %v362
        %v443 = vunpack.c.l.b16 %v363
        %v444 = vunpack.c.l.b16 %v364
        %v445 = vunpack.c.l.b16 %v365
        %v446 = vunpack.c.l.b16 %v366
        %v447 = vunpack.c.l.b16 %v367
        %v448 = vunpack.c.l.b16 %v368
        %v449 = vunpack.c.l.b16 %v369
        %v450 = vunpack.c.l.b16 %v370
        %v451 = vunpack.c.l.b16 %v371
        %v452 = vunpack.c.l.b16 %v372
        %v453 = vunpack.c.l.b16 %v373
        %v454 = vunpack.c.l.b16 %v374
        %v455 = vpack.c.b16 %v424, %v423
        %v456 = vpack.c.b16 %v426, %v425
        %v457 = vpack.c.b16 %v428, %v427
        %v458 = vpack.c.b16 %v430, %v429
        %v459 = vpack.c.b16 %v432, %v431
        %v460 = vpack.c.b16 %v434, %v433
        %v461 = vpack.c.b16 %v436, %v435
        %v462 = vpack.c.b16 %v438, %v437
        %v463 = vpack.c.b16 %v440, %v439
        %v464 = vpack.c.b16 %v442, %v441
        %v465 = vpack.c.b16 %v444, %v443
        %v466 = vpack.c.b16 %v446, %v445
        %v467 = vpack.c.b16 %v448, %v447
        %v468 = vpack.c.b16 %v450, %v449
        %v469 = vpack.c.b16 %v452, %v451
        %v470 = vpack.c.b16 %v454, %v453
        %v503 = vunpack.c.l.b16 %v375
        %v504 = vunpack.c.l.b16 %v376
        %v505 = vunpack.c.l.b16 %v377
        %v506 = vunpack.c.l.b16 %v378
        %v507 = vunpack.c.l.b16 %v379
        %v508 = vunpack.c.l.b16 %v380
        %v509 = vunpack.c.l.b16 %v381
        %v510 = vunpack.c.l.b16 %v382
        %v511 = vunpack.c.l.b16 %v383
        %v512 = vunpack.c.l.b16 %v384
        %v513 = vunpack.c.l.b16 %v385
        %v514 = vunpack.c.l.b16 %v386
        %v515 = vunpack.c.l.b16 %v387
        %v516 = vunpack.c.l.b16 %v388
        %v517 = vunpack.c.l.b16 %v389
        %v518 = vunpack.c.l.b16 %v390
        %v519 = vpack.c.b16 %v504, %v503
        %v520 = vpack.c.b16 %v506, %v505
        %v521 = vpack.c.b16 %v508, %v507
        %v522 = vpack.c.b16 %v510, %v509
        %v523 = vpack.c.b16 %v512, %v511
        %v524 = vpack.c.b16 %v514, %v513
        %v525 = vpack.c.b16 %v516, %v515
        %v526 = vpack.c.b16 %v518, %v517
        %535 = vmatprep.subr.bf16.mxu0 0
        %536 = vmatpush1.bf16.msra.mxu0 %v519
        %537 = vmatprep.subr.bf16.mxu0 0
        %538 = vmatpush1.bf16.msra.mxu0 %v520
        %539 = vmatprep.subr.bf16.mxu0 0
        %540 = vmatpush1.bf16.msra.mxu0 %v521
        %541 = vmatprep.subr.bf16.mxu0 0
        %542 = vmatpush1.bf16.msra.mxu0 %v522
        %543 = vmatprep.subr.bf16.mxu0 0
        %544 = vmatpush1.bf16.msra.mxu0 %v523
        %545 = vmatprep.subr.bf16.mxu0 0
        %546 = vmatpush1.bf16.msra.mxu0 %v524
        %547 = vmatprep.subr.bf16.mxu0 0
        %548 = vmatpush1.bf16.msra.mxu0 %v525
        %549 = vmatprep.subr.bf16.mxu0 0
        %550 = vmatpush1.bf16.msra.mxu0 %v526
        %551 = vmatprep.subr.bf16.mxu0 0
        %552 = vmatpush1.bf16.msra.mxu0 0
        %553 = vmatprep.subr.bf16.mxu0 0
        %554 = vmatpush1.bf16.msra.mxu0 0
        %555 = vmatprep.subr.bf16.mxu0 0
        %556 = vmatpush1.bf16.msra.mxu0 0
        %557 = vmatprep.subr.bf16.mxu0 0
        %558 = vmatpush1.bf16.msra.mxu0 0
        %559 = vmatprep.subr.bf16.mxu0 0
        %560 = vmatpush1.bf16.msra.mxu0 0
        %561 = vmatprep.subr.bf16.mxu0 0
        %562 = vmatpush1.bf16.msra.mxu0 0
        %563 = vmatprep.subr.bf16.mxu0 0
        %564 = vmatpush1.bf16.msra.mxu0 0
        %565 = vmatprep.subr.bf16.mxu0 0
        %566 = vmatpush1.bf16.msra.mxu0 0
        %567 = vmatprep.mubr.bf16.mxu0 0
        %568 = vmatmul.mubr.bf16.gmra.mrb[0].mxu0 %v455
        %v569 = vpop.f32.mrb[0].mxu0
        %v570 = vadd.f32 0.0, %v569
        %v571 = vpop.f32.mrb[0].mxu0
        %v572 = vpop.f32.mrb[0].mxu0
        %v573 = vadd.f32 0.0, %v572
        %v574 = vpop.f32.mrb[0].mxu0
        %575 = vmatprep.mubr.bf16.mxu0 0
        %576 = vmatmul.mubr.bf16.gmra.mrb[0].mxu0 %v456
        %v577 = vpop.f32.mrb[0].mxu0
        %v578 = vadd.f32 0.0, %v577
        %v579 = vpop.f32.mrb[0].mxu0
        %v580 = vpop.f32.mrb[0].mxu0
        %v581 = vadd.f32 0.0, %v580
        %v582 = vpop.f32.mrb[0].mxu0
        %583 = vmatprep.mubr.bf16.mxu0 0
        %584 = vmatmul.mubr.bf16.gmra.mrb[0].mxu0 %v457
        %v585 = vpop.f32.mrb[0].mxu0
        %v586 = vadd.f32 0.0, %v585
        %v587 = vpop.f32.mrb[0].mxu0
        %v588 = vpop.f32.mrb[0].mxu0
        %v589 = vadd.f32 0.0, %v588
        %v590 = vpop.f32.mrb[0].mxu0
        %591 = vmatprep.mubr.bf16.mxu0 0
        %592 = vmatmul.mubr.bf16.gmra.mrb[0].mxu0 %v458
        %v593 = vpop.f32.mrb[0].mxu0
        %v594 = vadd.f32 0.0, %v593
        %v595 = vpop.f32.mrb[0].mxu0
        %v596 = vpop.f32.mrb[0].mxu0
        %v597 = vadd.f32 0.0, %v596
        %v598 = vpop.f32.mrb[0].mxu0
        %599 = vmatprep.mubr.bf16.mxu0 0
        %600 = vmatmul.mubr.bf16.gmra.mrb[0].mxu0 %v459
        %v601 = vpop.f32.mrb[0].mxu0
        %v602 = vadd.f32 0.0, %v601
        %v603 = vpop.f32.mrb[0].mxu0
        %v604 = vpop.f32.mrb[0].mxu0
        %v605 = vadd.f32 0.0, %v604
        %v606 = vpop.f32.mrb[0].mxu0
        %607 = vmatprep.mubr.bf16.mxu0 0
        %608 = vmatmul.mubr.bf16.gmra.mrb[0].mxu0 %v460
        %v609 = vpop.f32.mrb[0].mxu0
        %v610 = vadd.f32 0.0, %v609
        %v611 = vpop.f32.mrb[0].mxu0
        %v612 = vpop.f32.mrb[0].mxu0
        %v613 = vadd.f32 0.0, %v612
        %v614 = vpop.f32.mrb[0].mxu0
        %615 = vmatprep.mubr.bf16.mxu0 0
        %616 = vmatmul.mubr.bf16.gmra.mrb[0].mxu0 %v461
        %v617 = vpop.f32.mrb[0].mxu0
        %v618 = vadd.f32 0.0, %v617
        %v619 = vpop.f32.mrb[0].mxu0
        %v620 = vpop.f32.mrb[0].mxu0
        %v621 = vadd.f32 0.0, %v620
        %v622 = vpop.f32.mrb[0].mxu0
        %623 = vmatprep.mubr.bf16.mxu0 0
        %624 = vmatmul.mubr.bf16.gmra.mrb[0].mxu0 %v462
        %v625 = vpop.f32.mrb[0].mxu0
        %v626 = vadd.f32 0.0, %v625
        %v627 = vpop.f32.mrb[0].mxu0
        %v628 = vpop.f32.mrb[0].mxu0
        %v629 = vadd.f32 0.0, %v628
        %v630 = vpop.f32.mrb[0].mxu0
        %631 = vmatprep.mubr.bf16.mxu0 0
        %632 = vmatmul.mubr.bf16.gmra.mrb[0].mxu0 %v463
        %v633 = vpop.f32.mrb[0].mxu0
        %v634 = vadd.f32 0.0, %v633
        %v635 = vpop.f32.mrb[0].mxu0
        %v636 = vpop.f32.mrb[0].mxu0
        %v637 = vadd.f32 0.0, %v636
        %v638 = vpop.f32.mrb[0].mxu0
        %639 = vmatprep.mubr.bf16.mxu0 0
        %640 = vmatmul.mubr.bf16.gmra.mrb[0].mxu0 %v464
        %v641 = vpop.f32.mrb[0].mxu0
        %v642 = vadd.f32 0.0, %v641
        %v643 = vpop.f32.mrb[0].mxu0
        %v644 = vpop.f32.mrb[0].mxu0
        %v645 = vadd.f32 0.0, %v644
        %v646 = vpop.f32.mrb[0].mxu0
        %647 = vmatprep.mubr.bf16.mxu0 0
        %648 = vmatmul.mubr.bf16.gmra.mrb[0].mxu0 %v465
        %v649 = vpop.f32.mrb[0].mxu0
        %v650 = vadd.f32 0.0, %v649
        %v651 = vpop.f32.mrb[0].mxu0
        %v652 = vpop.f32.mrb[0].mxu0
        %v653 = vadd.f32 0.0, %v652
        %v654 = vpop.f32.mrb[0].mxu0
        %655 = vmatprep.mubr.bf16.mxu0 0
        %656 = vmatmul.mubr.bf16.gmra.mrb[0].mxu0 %v466
        %v657 = vpop.f32.mrb[0].mxu0
        %v658 = vadd.f32 0.0, %v657
        %v659 = vpop.f32.mrb[0].mxu0
        %v660 = vpop.f32.mrb[0].mxu0
        %v661 = vadd.f32 0.0, %v660
        %v662 = vpop.f32.mrb[0].mxu0
        %663 = vmatprep.mubr.bf16.mxu0 0
        %664 = vmatmul.mubr.bf16.gmra.mrb[0].mxu0 %v467
        %v665 = vpop.f32.mrb[0].mxu0
        %v666 = vadd.f32 0.0, %v665
        %v667 = vpop.f32.mrb[0].mxu0
        %v668 = vpop.f32.mrb[0].mxu0
        %v669 = vadd.f32 0.0, %v668
        %v670 = vpop.f32.mrb[0].mxu0
        %671 = vmatprep.mubr.bf16.mxu0 0
        %672 = vmatmul.mubr.bf16.gmra.mrb[0].mxu0 %v468
        %v673 = vpop.f32.mrb[0].mxu0
        %v674 = vadd.f32 0.0, %v673
        %v675 = vpop.f32.mrb[0].mxu0
        %v676 = vpop.f32.mrb[0].mxu0
        %v677 = vadd.f32 0.0, %v676
        %v678 = vpop.f32.mrb[0].mxu0
        %679 = vmatprep.mubr.bf16.mxu0 0
        %680 = vmatmul.mubr.bf16.gmra.mrb[0].mxu0 %v469
        %v681 = vpop.f32.mrb[0].mxu0
        %v682 = vadd.f32 0.0, %v681
        %v683 = vpop.f32.mrb[0].mxu0
        %v684 = vpop.f32.mrb[0].mxu0
        %v685 = vadd.f32 0.0, %v684
        %v686 = vpop.f32.mrb[0].mxu0
        %687 = vmatprep.mubr.bf16.mxu0 0
        %688 = vmatmul.mubr.bf16.gmra.mrb[0].mxu0 %v470
        %v689 = vpop.f32.mrb[0].mxu0
        %v690 = vadd.f32 0.0, %v689
        %v691 = vpop.f32.mrb[0].mxu0
        %v692 = vpop.f32.mrb[0].mxu0
        %v693 = vadd.f32 0.0, %v692
        %v694 = vpop.f32.mrb[0].mxu0
        %695 = vdwg.mxu0
        %v696 = vadd.f32 %v311, %v570
        %v697 = vadd.f32 %v312, %v573
        %v698 = vadd.f32 %v313, %v578
        %v699 = vadd.f32 %v314, %v581
        %v700 = vadd.f32 %v315, %v586
        %v701 = vadd.f32 %v316, %v589
        %v702 = vadd.f32 %v317, %v594
        %v703 = vadd.f32 %v318, %v597
        %v704 = vadd.f32 %v319, %v602
        %v705 = vadd.f32 %v320, %v605
        %v706 = vadd.f32 %v321, %v610
        %v707 = vadd.f32 %v322, %v613
        %v708 = vadd.f32 %v323, %v618
        %v709 = vadd.f32 %v324, %v621
        %v710 = vadd.f32 %v325, %v626
        %v711 = vadd.f32 %v326, %v629
        %v712 = vadd.f32 %v327, %v634
        %v713 = vadd.f32 %v328, %v637
        %v714 = vadd.f32 %v329, %v642
        %v715 = vadd.f32 %v330, %v645
        %v716 = vadd.f32 %v331, %v650
        %v717 = vadd.f32 %v332, %v653
        %v718 = vadd.f32 %v333, %v658
        %v719 = vadd.f32 %v334, %v661
        %v720 = vadd.f32 %v335, %v666
        %v721 = vadd.f32 %v336, %v669
        %v722 = vadd.f32 %v337, %v674
        %v723 = vadd.f32 %v338, %v677
        %v724 = vadd.f32 %v339, %v682
        %v725 = vadd.f32 %v340, %v685
        %v726 = vadd.f32 %v341, %v690
        %v727 = vadd.f32 %v342, %v693
        %728 = vst [vmem:[#allocation2] sm:$0xff] %v696
        %729 = vst [vmem:[#allocation2 + $0x8] sm:$0xff] %v697
        %730 = vst [vmem:[#allocation2 + $0x10] sm:$0xff] %v698
        %731 = vst [vmem:[#allocation2 + $0x18] sm:$0xff] %v699
        %732 = vst [vmem:[#allocation2 + $0x20] sm:$0xff] %v700
        %733 = vst [vmem:[#allocation2 + $0x28] sm:$0xff] %v701
        %734 = vst [vmem:[#allocation2 + $0x30] sm:$0xff] %v702
        %735 = vst [vmem:[#allocation2 + $0x38] sm:$0xff] %v703
        %736 = vst [vmem:[#allocation2 + $0x40] sm:$0xff] %v704
        %737 = vst [vmem:[#allocation2 + $0x48] sm:$0xff] %v705
        %738 = vst [vmem:[#allocation2 + $0x50] sm:$0xff] %v706
        %739 = vst [vmem:[#allocation2 + $0x58] sm:$0xff] %v707
        %740 = vst [vmem:[#allocation2 + $0x60] sm:$0xff] %v708
        %741 = vst [vmem:[#allocation2 + $0x68] sm:$0xff] %v709
        %742 = vst [vmem:[#allocation2 + $0x70] sm:$0xff] %v710
        %743 = vst [vmem:[#allocation2 + $0x78] sm:$0xff] %v711
        %744 = vst [vmem:[#allocation2 + $0x80] sm:$0xff] %v712
        %745 = vst [vmem:[#allocation2 + $0x88] sm:$0xff] %v713
        %746 = vst [vmem:[#allocation2 + $0x90] sm:$0xff] %v714
        %747 = vst [vmem:[#allocation2 + $0x98] sm:$0xff] %v715
        %748 = vst [vmem:[#allocation2 + $0xa0] sm:$0xff] %v716
        %749 = vst [vmem:[#allocation2 + $0xa8] sm:$0xff] %v717
        %750 = vst [vmem:[#allocation2 + $0xb0] sm:$0xff] %v718
        %751 = vst [vmem:[#allocation2 + $0xb8] sm:$0xff] %v719
        %752 = vst [vmem:[#allocation2 + $0xc0] sm:$0xff] %v720
        %753 = vst [vmem:[#allocation2 + $0xc8] sm:$0xff] %v721
        %754 = vst [vmem:[#allocation2 + $0xd0] sm:$0xff] %v722
        %755 = vst [vmem:[#allocation2 + $0xd8] sm:$0xff] %v723
        %756 = vst [vmem:[#allocation2 + $0xe0] sm:$0xff] %v724
        %757 = vst [vmem:[#allocation2 + $0xe8] sm:$0xff] %v725
        %758 = vst [vmem:[#allocation2 + $0xf0] sm:$0xff] %v726
        %759 = vst [vmem:[#allocation2 + $0xf8] sm:$0xff] %v727
        %p760 = scmp.eq.s32.totalorder %s30, 1
        // Predicated region
        $region45: #{tpu_custom_call.1} parent=31 // pred_check
          %p761 = pneg %p760
        $region46: #{tpu_custom_call.1} parent=31 // pred_check_branch
          %763 = sbr.rel (%p761) target = $region48
        $region47: #{tpu_custom_call.1} parent=31 // pred_region
          %v764 = vld [vmem:[#allocation2] sm:$0xff]
          %v765 = vld [vmem:[#allocation2 + $0x8] sm:$0xff]
          %v766 = vld [vmem:[#allocation2 + $0x10] sm:$0xff]
          %v767 = vld [vmem:[#allocation2 + $0x18] sm:$0xff]
          %v768 = vld [vmem:[#allocation2 + $0x20] sm:$0xff]
          %v769 = vld [vmem:[#allocation2 + $0x28] sm:$0xff]
          %v770 = vld [vmem:[#allocation2 + $0x30] sm:$0xff]
          %v771 = vld [vmem:[#allocation2 + $0x38] sm:$0xff]
          %v772 = vld [vmem:[#allocation2 + $0x40] sm:$0xff]
          %v773 = vld [vmem:[#allocation2 + $0x48] sm:$0xff]
          %v774 = vld [vmem:[#allocation2 + $0x50] sm:$0xff]
          %v775 = vld [vmem:[#allocation2 + $0x58] sm:$0xff]
          %v776 = vld [vmem:[#allocation2 + $0x60] sm:$0xff]
          %v777 = vld [vmem:[#allocation2 + $0x68] sm:$0xff]
          %v778 = vld [vmem:[#allocation2 + $0x70] sm:$0xff]
          %v779 = vld [vmem:[#allocation2 + $0x78] sm:$0xff]
          %v780 = vld [vmem:[#allocation2 + $0x80] sm:$0xff]
          %v781 = vld [vmem:[#allocation2 + $0x88] sm:$0xff]
          %v782 = vld [vmem:[#allocation2 + $0x90] sm:$0xff]
          %v783 = vld [vmem:[#allocation2 + $0x98] sm:$0xff]
          %v784 = vld [vmem:[#allocation2 + $0xa0] sm:$0xff]
          %v785 = vld [vmem:[#allocation2 + $0xa8] sm:$0xff]
          %v786 = vld [vmem:[#allocation2 + $0xb0] sm:$0xff]
          %v787 = vld [vmem:[#allocation2 + $0xb8] sm:$0xff]
          %v788 = vld [vmem:[#allocation2 + $0xc0] sm:$0xff]
          %v789 = vld [vmem:[#allocation2 + $0xc8] sm:$0xff]
          %v790 = vld [vmem:[#allocation2 + $0xd0] sm:$0xff]
          %v791 = vld [vmem:[#allocation2 + $0xd8] sm:$0xff]
          %v792 = vld [vmem:[#allocation2 + $0xe0] sm:$0xff]
          %v793 = vld [vmem:[#allocation2 + $0xe8] sm:$0xff]
          %v794 = vld [vmem:[#allocation2 + $0xf0] sm:$0xff]
          %v795 = vld [vmem:[#allocation2 + $0xf8] sm:$0xff]
          %v796 = vld [vmem:[%s272] sm:$0x1]
          %v798 = vlaneseq
          %v799 = vshrl.u32 %v798, 7
          %v800 = vsub.s32 0, %v799
          %v801 = vrot.slane %v796, %v800
          %v803 = vadd.f32 %v764, %v801
          %v804 = vadd.f32 %v765, %v801
          %v805 = vadd.f32 %v766, %v801
          %v806 = vadd.f32 %v767, %v801
          %v807 = vadd.f32 %v768, %v801
          %v808 = vadd.f32 %v769, %v801
          %v809 = vadd.f32 %v770, %v801
          %v810 = vadd.f32 %v771, %v801
          %v811 = vadd.f32 %v772, %v801
          %v812 = vadd.f32 %v773, %v801
          %v813 = vadd.f32 %v774, %v801
          %v814 = vadd.f32 %v775, %v801
          %v815 = vadd.f32 %v776, %v801
          %v816 = vadd.f32 %v777, %v801
          %v817 = vadd.f32 %v778, %v801
          %v818 = vadd.f32 %v779, %v801
          %v819 = vadd.f32 %v780, %v801
          %v820 = vadd.f32 %v781, %v801
          %v821 = vadd.f32 %v782, %v801
          %v822 = vadd.f32 %v783, %v801
          %v823 = vadd.f32 %v784, %v801
          %v824 = vadd.f32 %v785, %v801
          %v825 = vadd.f32 %v786, %v801
          %v826 = vadd.f32 %v787, %v801
          %v827 = vadd.f32 %v788, %v801
          %v828 = vadd.f32 %v789, %v801
          %v829 = vadd.f32 %v790, %v801
          %v830 = vadd.f32 %v791, %v801
          %v831 = vadd.f32 %v792, %v801
          %v832 = vadd.f32 %v793, %v801
          %v833 = vadd.f32 %v794, %v801
          %v834 = vadd.f32 %v795, %v801
          %v835 = vmax.f32 %v803, 0.0
          %v836 = vmax.f32 %v804, 0.0
          %v837 = vmax.f32 %v805, 0.0
          %v838 = vmax.f32 %v806, 0.0
          %v839 = vmax.f32 %v807, 0.0
          %v840 = vmax.f32 %v808, 0.0
          %v841 = vmax.f32 %v809, 0.0
          %v842 = vmax.f32 %v810, 0.0
          %v843 = vmax.f32 %v811, 0.0
          %v844 = vmax.f32 %v812, 0.0
          %v845 = vmax.f32 %v813, 0.0
          %v846 = vmax.f32 %v814, 0.0
          %v847 = vmax.f32 %v815, 0.0
          %v848 = vmax.f32 %v816, 0.0
          %v849 = vmax.f32 %v817, 0.0
          %v850 = vmax.f32 %v818, 0.0
          %v851 = vmax.f32 %v819, 0.0
          %v852 = vmax.f32 %v820, 0.0
          %v853 = vmax.f32 %v821, 0.0
          %v854 = vmax.f32 %v822, 0.0
          %v855 = vmax.f32 %v823, 0.0
          %v856 = vmax.f32 %v824, 0.0
          %v857 = vmax.f32 %v825, 0.0
          %v858 = vmax.f32 %v826, 0.0
          %v859 = vmax.f32 %v827, 0.0
          %v860 = vmax.f32 %v828, 0.0
          %v861 = vmax.f32 %v829, 0.0
          %v862 = vmax.f32 %v830, 0.0
          %v863 = vmax.f32 %v831, 0.0
          %v864 = vmax.f32 %v832, 0.0
          %v865 = vmax.f32 %v833, 0.0
          %v866 = vmax.f32 %v834, 0.0
          %v867 = vpack.c.bf16 %v836, %v835
          %v868 = vpack.c.bf16 %v838, %v837
          %v869 = vpack.c.bf16 %v840, %v839
          %v870 = vpack.c.bf16 %v842, %v841
          %v871 = vpack.c.bf16 %v844, %v843
          %v872 = vpack.c.bf16 %v846, %v845
          %v873 = vpack.c.bf16 %v848, %v847
          %v874 = vpack.c.bf16 %v850, %v849
          %v875 = vpack.c.bf16 %v852, %v851
          %v876 = vpack.c.bf16 %v854, %v853
          %v877 = vpack.c.bf16 %v856, %v855
          %v878 = vpack.c.bf16 %v858, %v857
          %v879 = vpack.c.bf16 %v860, %v859
          %v880 = vpack.c.bf16 %v862, %v861
          %v881 = vpack.c.bf16 %v864, %v863
          %v882 = vpack.c.bf16 %v866, %v865
          %v899 = vunpack.c.l.b16 %v867
          %v900 = vunpack.c.h.b16 %v867
          %v901 = vunpack.c.l.b16 %v868
          %v902 = vunpack.c.h.b16 %v868
          %v903 = vunpack.c.l.b16 %v869
          %v904 = vunpack.c.h.b16 %v869
          %v905 = vunpack.c.l.b16 %v870
          %v906 = vunpack.c.h.b16 %v870
          %v907 = vunpack.c.l.b16 %v871
          %v908 = vunpack.c.h.b16 %v871
          %v909 = vunpack.c.l.b16 %v872
          %v910 = vunpack.c.h.b16 %v872
          %v911 = vunpack.c.l.b16 %v873
          %v912 = vunpack.c.h.b16 %v873
          %v913 = vunpack.c.l.b16 %v874
          %v914 = vunpack.c.h.b16 %v874
          %v915 = vunpack.c.l.b16 %v875
          %v916 = vunpack.c.h.b16 %v875
          %v917 = vunpack.c.l.b16 %v876
          %v918 = vunpack.c.h.b16 %v876
          %v919 = vunpack.c.l.b16 %v877
          %v920 = vunpack.c.h.b16 %v877
          %v921 = vunpack.c.l.b16 %v878
          %v922 = vunpack.c.h.b16 %v878
          %v923 = vunpack.c.l.b16 %v879
          %v924 = vunpack.c.h.b16 %v879
          %v925 = vunpack.c.l.b16 %v880
          %v926 = vunpack.c.h.b16 %v880
          %v927 = vunpack.c.l.b16 %v881
          %v928 = vunpack.c.h.b16 %v881
          %v929 = vunpack.c.l.b16 %v882
          %v930 = vunpack.c.h.b16 %v882
          %v931 = vpack.c.b16 %v899, %v899
          %v932 = vpack.c.b16 %v900, %v900
          %v933 = vpack.c.b16 %v901, %v901
          %v934 = vpack.c.b16 %v902, %v902
          %v935 = vpack.c.b16 %v903, %v903
          %v936 = vpack.c.b16 %v904, %v904
          %v937 = vpack.c.b16 %v905, %v905
          %v938 = vpack.c.b16 %v906, %v906
          %v939 = vpack.c.b16 %v907, %v907
          %v940 = vpack.c.b16 %v908, %v908
          %v941 = vpack.c.b16 %v909, %v909
          %v942 = vpack.c.b16 %v910, %v910
          %v943 = vpack.c.b16 %v911, %v911
          %v944 = vpack.c.b16 %v912, %v912
          %v945 = vpack.c.b16 %v913, %v913
          %v946 = vpack.c.b16 %v914, %v914
          %v947 = vpack.c.b16 %v915, %v915
          %v948 = vpack.c.b16 %v916, %v916
          %v949 = vpack.c.b16 %v917, %v917
          %v950 = vpack.c.b16 %v918, %v918
          %v951 = vpack.c.b16 %v919, %v919
          %v952 = vpack.c.b16 %v920, %v920
          %v953 = vpack.c.b16 %v921, %v921
          %v954 = vpack.c.b16 %v922, %v922
          %v955 = vpack.c.b16 %v923, %v923
          %v956 = vpack.c.b16 %v924, %v924
          %v957 = vpack.c.b16 %v925, %v925
          %v958 = vpack.c.b16 %v926, %v926
          %v959 = vpack.c.b16 %v927, %v927
          %v960 = vpack.c.b16 %v928, %v928
          %v961 = vpack.c.b16 %v929, %v929
          %v962 = vpack.c.b16 %v930, %v930
          %995 = vst [vmem:[%s267] sm:$0xf] %v931
          %996 = vst [vmem:[%s267 + $0x4] sm:$0xf] %v932
          %997 = vst [vmem:[%s267 + $0x8] sm:$0xf] %v933
          %998 = vst [vmem:[%s267 + $0xc] sm:$0xf] %v934
          %999 = vst [vmem:[%s267 + $0x10] sm:$0xf] %v935
          %1000 = vst [vmem:[%s267 + $0x14] sm:$0xf] %v936
          %1001 = vst [vmem:[%s267 + $0x18] sm:$0xf] %v937
          %1002 = vst [vmem:[%s267 + $0x1c] sm:$0xf] %v938
          %1003 = vst [vmem:[%s267 + $0x20] sm:$0xf] %v939
          %1004 = vst [vmem:[%s267 + $0x24] sm:$0xf] %v940
          %1005 = vst [vmem:[%s267 + $0x28] sm:$0xf] %v941
          %1006 = vst [vmem:[%s267 + $0x2c] sm:$0xf] %v942
          %1007 = vst [vmem:[%s267 + $0x30] sm:$0xf] %v943
          %1008 = vst [vmem:[%s267 + $0x34] sm:$0xf] %v944
          %1009 = vst [vmem:[%s267 + $0x38] sm:$0xf] %v945
          %1010 = vst [vmem:[%s267 + $0x3c] sm:$0xf] %v946
          %1011 = vst [vmem:[%s267 + $0x40] sm:$0xf] %v947
          %1012 = vst [vmem:[%s267 + $0x44] sm:$0xf] %v948
          %1013 = vst [vmem:[%s267 + $0x48] sm:$0xf] %v949
          %1014 = vst [vmem:[%s267 + $0x4c] sm:$0xf] %v950
          %1015 = vst [vmem:[%s267 + $0x50] sm:$0xf] %v951
          %1016 = vst [vmem:[%s267 + $0x54] sm:$0xf] %v952
          %1017 = vst [vmem:[%s267 + $0x58] sm:$0xf] %v953
          %1018 = vst [vmem:[%s267 + $0x5c] sm:$0xf] %v954
          %1019 = vst [vmem:[%s267 + $0x60] sm:$0xf] %v955
          %1020 = vst [vmem:[%s267 + $0x64] sm:$0xf] %v956
          %1021 = vst [vmem:[%s267 + $0x68] sm:$0xf] %v957
          %1022 = vst [vmem:[%s267 + $0x6c] sm:$0xf] %v958
          %1023 = vst [vmem:[%s267 + $0x70] sm:$0xf] %v959
          %1024 = vst [vmem:[%s267 + $0x74] sm:$0xf] %v960
          %1025 = vst [vmem:[%s267 + $0x78] sm:$0xf] %v961
          %1026 = vst [vmem:[%s267 + $0x7c] sm:$0xf] %v962
        $region48: #{tpu_custom_call.1} parent=31 // pred_fallthru
          _
        %s1027 = sand.u32 %s134, 1
        %s1028 = scalar_lea.sflag [#allocation5], %s1027
        %s1029 = sand.u32 %s134, 1
        %s1030 = smul.addr %s1029, 128
        %s1031 = scalar_lea.vmem [#allocation8], %s1030
        // Predicated region
        $region49: #{tpu_custom_call.1} parent=31 // pred_check
          %p1032 = pneg %p144
        $region50: #{tpu_custom_call.1} parent=31 // pred_check_branch
          %1034 = sbr.rel (%p1032) target = $region52
        $region51: #{tpu_custom_call.1} parent=31 // pred_region
          %s1035 = smul.u32 32, %s28
          %s1037 = ssub.s32 2048, 2048
          %1038 = vsyncadd %s1028, %s1037
          %s1039 = sadd.s32 %s29, %s1035
          %s1040 = smul.addr %s1039, 64
          %s1041 = scalar_lea.hbm %s3, %s1040
          %s1042 = sshll.u32 %s1031, 4
          %s1043 = int_to_ptr.vmem [resolvable:$true] %s1042
          %1048 = dma.vmem_to_hbm [thread:$0]  %s1043, 2048, %s1041, %s1028, 64, 64, 4
        $region52: #{tpu_custom_call.1} parent=31 // pred_fallthru
          _
      $region32: #{tpu_custom_call.1} parent=5 // pred_fallthru
        _
      %p1049 = scmp.le.s32.totalorder 2, %s18
      // Predicated region
      $region53: #{tpu_custom_call.1} parent=5 // pred_check
        %p1050 = pneg %p1049
      $region54: #{tpu_custom_call.1} parent=5 // pred_check_branch
        %1052 = sbr.rel (%p1050) target = $region56
      $region55: #{tpu_custom_call.1} parent=5 // pred_region
        %s1053 = ssub.s32 %s18, 2
        // Predicated region
        $region57: #{tpu_custom_call.1} parent=55 // pred_check
          %p1054 = pneg %p150
        $region58: #{tpu_custom_call.1} parent=55 // pred_check_branch
          %1056 = sbr.rel (%p1054) target = $region60
        $region59: #{tpu_custom_call.1} parent=55 // pred_region
          %s1057 = sand.u32 %s135, 1
          %s1058 = scalar_lea.sflag [#allocation5], %s1057
          %s1059 = sand.u32 %s135, 1
          %s1060 = smul.addr %s1059, 128
          %s1061 = scalar_lea.vmem [#allocation8], %s1060
          %1062 = dma.done %s1058, 2048
        $region60: #{tpu_custom_call.1} parent=55 // pred_fallthru
          _
      $region56: #{tpu_custom_call.1} parent=5 // pred_fallthru
        _
    $region6: #{tpu_custom_call.1} parent=1 // loop_footer
      %s22 = sadd.s32 1, %s18
    $region7: #{tpu_custom_call.1} parent=1 // loop_footer_branch
      %17 = sbr.rel target = $region3
    $region8: #{tpu_custom_call.1} parent=1 // loop_exit
      _
    %1063 = vsyncpa [#allocation4], 1
    %s1064 = scalar_lea.sflag [#allocation4], 1
    %1065 = vsyncpa %s1064, 1
    %1066 = vsyncpa [#allocation7], 1
    %s1067 = scalar_lea.sflag [#allocation7], 1
    %1068 = vsyncpa %s1067, 1
    %1069 = vsyncpa [#allocation5], 1
    %s1070 = scalar_lea.sflag [#allocation5], 1
    %1071 = vsyncpa %s1070, 1

</llo_original>
